<compile_context>
chip_gen: v7x
topology: tpu7x:2x2x1
jax: 0.10.0
libtpu: 0.0.40
codegen_flags: <defaults>
</compile_context>

<pallas_src>
import functools

import jax
import jax.numpy as jnp
from jax.experimental import pallas as pl
from jax.experimental.pallas import tpu as pltpu

K1 = 0.01
K2 = 0.03
C1 = (K1 * 1.0) ** 2
C2 = (K2 * 1.0) ** 2

_LANES = 128


def _cdiv(a, b):
    return -(-a // b)


def _round_up(a, b):
    return _cdiv(a, b) * b


def _ssim_sums_kernel(y_ref, p_ref, o_ref, *, row_tile):
    """Accumulate per-lane partial sums for one (row_tile, 128) tile.

    o_ref block shape: (1, 5, 8, 128) -- resident across the inner grid axis
    (its index_map depends only on the outer 'parallel' axis), so it acts as
    the accumulator for this core's slice of the stream.
    """
    i = pl.program_id(1)

    @pl.when(i == 0)
    def _():
        o_ref[...] = jnp.zeros_like(o_ref)

    y = y_ref[...].astype(jnp.float32)
    p = p_ref[...].astype(jnp.float32)

    # (row_tile, 128) -> (row_tile // 8, 8, 128); summing over axis 0 is a
    # chain of elementwise (8, 128)-vreg adds -> pure VPU, no XLU traffic.
    yr = y.reshape(row_tile // 8, 8, _LANES)
    pr = p.reshape(row_tile // 8, 8, _LANES)

    o_ref[0, 0] += jnp.sum(yr, axis=0)
    o_ref[0, 1] += jnp.sum(pr, axis=0)
    o_ref[0, 2] += jnp.sum(yr * yr, axis=0)
    o_ref[0, 3] += jnp.sum(pr * pr, axis=0)
    o_ref[0, 4] += jnp.sum(yr * pr, axis=0)


def ssim_loss(y, p, *, row_tile=1024, num_core_splits=2):
    """Global (non-windowed) SSIM loss, matching SSIM_loss(windowed=False)."""
    assert y.shape == p.shape, (y.shape, p.shape)
    n_elems = int(y.size)
    assert n_elems > 1, "need at least 2 elements (unbiased std)"

    itemsize = jnp.dtype(y.dtype).itemsize
    # Sublane alignment: 8 for 32-bit, 16 for 16-bit, 32 for 8-bit dtypes.
    align = 8 if itemsize >= 4 else (16 if itemsize == 2 else 32)

    rows = _cdiv(n_elems, _LANES)
    row_tile = max(align, min(int(row_tile), _round_up(rows, align)))
    row_tile = _round_up(row_tile, align)

    num_cores = int(num_core_splits)
    inner = max(1, _cdiv(_cdiv(rows, num_cores), row_tile))
    rows_per_core = inner * row_tile
    rows_padded = rows_per_core * num_cores
    total_padded = rows_padded * _LANES
    pad = total_padded - n_elems

    y_flat = y.reshape(-1)
    p_flat = p.reshape(-1)
    if pad:
        y_flat = jnp.pad(y_flat, (0, pad))
        p_flat = jnp.pad(p_flat, (0, pad))
    y2d = y_flat.reshape(rows_padded, _LANES)
    p2d = p_flat.reshape(rows_padded, _LANES)

    kernel = functools.partial(_ssim_sums_kernel, row_tile=row_tile)

    def in_map(c, i):
        return (c * inner + i, 0)

    partial = pl.pallas_call(
        kernel,
        out_shape=jax.ShapeDtypeStruct((num_cores, 5, 8, _LANES), jnp.float32),
        grid=(num_cores, inner),
        in_specs=[
            pl.BlockSpec((row_tile, _LANES), in_map),
            pl.BlockSpec((row_tile, _LANES), in_map),
        ],
        out_specs=pl.BlockSpec((1, 5, 8, _LANES), lambda c, i: (c, 0, 0, 0)),
        compiler_params=pltpu.CompilerParams(
            dimension_semantics=("parallel", "arbitrary"),
        ),
    )(y2d, p2d)

    # Tiny final reduction + SSIM scalar math (XLA).
    sums = jnp.sum(partial, axis=(0, 2, 3))  # (5,)
    sum_y, sum_p = sums[0], sums[1]
    sum_y2, sum_p2, sum_yp = sums[2], sums[3], sums[4]

    n = jnp.float32(n_elems)
    muy = sum_y / n
    mup = sum_p / n
    # torch.std(...) ** 2  -> unbiased variance (ddof=1)
    var_y = (sum_y2 - n * muy * muy) / (n - 1.0)
    var_p = (sum_p2 - n * mup * mup) / (n - 1.0)
    # torch.mean((y - muy) * (p - mup))  -> biased covariance (ddof=0)
    sigyp = sum_yp / n - muy * mup

    num = (2.0 * mup * muy + C1) * (2.0 * sigyp + C2)
    den = (mup * mup + muy * muy + C1) * (var_y + var_p + C2)
    return jnp.float32(1.0) - num / den


def _ssim_loss_ref(y, p):
    y = y.astype(jnp.float32)
    p = p.astype(jnp.float32)
    muy = jnp.mean(y)
    mup = jnp.mean(p)
    var_y = jnp.var(y, ddof=1)
    var_p = jnp.var(p, ddof=1)
    sigyp = jnp.mean((y - muy) * (p - mup))
    num = (2.0 * mup * muy + C1) * (2.0 * sigyp + C2)
    den = (mup * mup + muy * muy + C1) * (var_y + var_p + C2)
    return 1.0 - num / den


if __name__ == "__main__":
    key = jax.random.PRNGKey(0)
    ky, kp = jax.random.split(key)
    # NCHW, like the PyTorch module's typical image inputs.
    y = jax.random.uniform(ky, (2, 4, 16, 16), dtype=jnp.float32)
    p = jax.random.uniform(kp, (2, 4, 16, 16), dtype=jnp.float32)

    out = ssim_loss(y, p)
    out = jax.block_until_ready(out)

    ref = _ssim_loss_ref(y, p)
    assert jnp.allclose(out, ref, rtol=1e-5, atol=1e-6), (out, ref)

    print("KERNEL_OK")
</pallas_src>

<mosaic_0001>
module attributes {stable_mosaic.version = 11 : i64} {
  func.func @_ssim_sums_kernel(%arg0: i32, %arg1: i32, %arg2: memref<16x128xf32, #tpu.memory_space<vmem>>, %arg3: memref<16x128xf32, #tpu.memory_space<vmem>>, %arg4: memref<1x5x8x128xf32, #tpu.memory_space<vmem>>) attributes {dimension_semantics = [#tpu.dimension_semantics<parallel>, #tpu.dimension_semantics<arbitrary>], iteration_bounds = array<i64: 2, 1>, scalar_prefetch = 0 : i64, scratch_operands = 0 : i64, tpu.core_type = #tpu.core_type<tc>, window_params = [{transform_indices = @transform_0, window_bounds = array<i64: 16, 128>}, {transform_indices = @transform_1, window_bounds = array<i64: 16, 128>}, {transform_indices = @transform_2, window_bounds = array<i64: 1, 5, 8, 128>}]} {
    %c0_i32 = arith.constant 0 : i32
    %0 = arith.cmpi eq, %arg1, %c0_i32 : i32
    %1 = arith.extui %0 : i1 to i32
    %c0_i32_0 = arith.constant 0 : i32
    %2 = arith.cmpi ne, %1, %c0_i32_0 : i32
    scf.if %2 {
      %cst_44 = arith.constant 0.000000e+00 : f32
      %45 = vector.broadcast %cst_44 : f32 to vector<1x5x8x128xf32>
      %c0_45 = arith.constant 0 : index
      %c0_46 = arith.constant 0 : index
      %c0_47 = arith.constant 0 : index
      %c0_48 = arith.constant 0 : index
      %46 = vector.load %arg4[%c0_45, %c0_46, %c0_47, %c0_48] : memref<1x5x8x128xf32, #tpu.memory_space<vmem>>, vector<1x5x8x128xf32>
      tpu.vector_store %arg4[%c0_45, %c0_46, %c0_47, %c0_48], %45 {strides = array<i32>} : memref<1x5x8x128xf32, #tpu.memory_space<vmem>>, vector<1x5x8x128xf32>,
    } else {
    }
    %c0 = arith.constant 0 : index
    %c0_1 = arith.constant 0 : index
    %3 = vector.load %arg2[%c0, %c0_1] : memref<16x128xf32, #tpu.memory_space<vmem>>, vector<16x128xf32>
    %c0_2 = arith.constant 0 : index
    %c0_3 = arith.constant 0 : index
    %4 = vector.load %arg3[%c0_2, %c0_3] : memref<16x128xf32, #tpu.memory_space<vmem>>, vector<16x128xf32>
    %5 = vector.shape_cast %3 : vector<16x128xf32> to vector<2x8x128xf32>
    %6 = vector.shape_cast %4 : vector<16x128xf32> to vector<2x8x128xf32>
    %c0_4 = arith.constant 0 : index
    %c0_5 = arith.constant 0 : index
    %c0_6 = arith.constant 0 : index
    %c0_7 = arith.constant 0 : index
    %7 = vector.load %arg4[%c0_4, %c0_5, %c0_6, %c0_7] : memref<1x5x8x128xf32, #tpu.memory_space<vmem>>, vector<1x1x8x128xf32>
    %8 = vector.shape_cast %7 : vector<1x1x8x128xf32> to vector<8x128xf32>
    %cst = arith.constant dense<0.000000e+00> : vector<8x128xf32>
    %9 = vector.multi_reduction <add>, %5, %cst [0] : vector<2x8x128xf32> to vector<8x128xf32>
    %10 = arith.addf %8, %9 : vector<8x128xf32>
    %c0_8 = arith.constant 0 : index
    %c0_9 = arith.constant 0 : index
    %c0_10 = arith.constant 0 : index
    %c0_11 = arith.constant 0 : index
    %11 = vector.load %arg4[%c0_8, %c0_9, %c0_10, %c0_11] : memref<1x5x8x128xf32, #tpu.memory_space<vmem>>, vector<1x1x8x128xf32>
    %12 = vector.shape_cast %11 : vector<1x1x8x128xf32> to vector<8x128xf32>
    %13 = vector.shape_cast %10 : vector<8x128xf32> to vector<1x1x8x128xf32>
    tpu.vector_store %arg4[%c0_8, %c0_9, %c0_10, %c0_11], %13 {strides = array<i32>} : memref<1x5x8x128xf32, #tpu.memory_space<vmem>>, vector<1x1x8x128xf32>,
    %c0_12 = arith.constant 0 : index
    %c1 = arith.constant 1 : index
    %c0_13 = arith.constant 0 : index
    %c0_14 = arith.constant 0 : index
    %14 = vector.load %arg4[%c0_12, %c1, %c0_13, %c0_14] : memref<1x5x8x128xf32, #tpu.memory_space<vmem>>, vector<1x1x8x128xf32>
    %15 = vector.shape_cast %14 : vector<1x1x8x128xf32> to vector<8x128xf32>
    %cst_15 = arith.constant dense<0.000000e+00> : vector<8x128xf32>
    %16 = vector.multi_reduction <add>, %6, %cst_15 [0] : vector<2x8x128xf32> to vector<8x128xf32>
    %17 = arith.addf %15, %16 : vector<8x128xf32>
    %c0_16 = arith.constant 0 : index
    %c1_17 = arith.constant 1 : index
    %c0_18 = arith.constant 0 : index
    %c0_19 = arith.constant 0 : index
    %18 = vector.load %arg4[%c0_16, %c1_17, %c0_18, %c0_19] : memref<1x5x8x128xf32, #tpu.memory_space<vmem>>, vector<1x1x8x128xf32>
    %19 = vector.shape_cast %18 : vector<1x1x8x128xf32> to vector<8x128xf32>
    %20 = vector.shape_cast %17 : vector<8x128xf32> to vector<1x1x8x128xf32>
    tpu.vector_store %arg4[%c0_16, %c1_17, %c0_18, %c0_19], %20 {strides = array<i32>} : memref<1x5x8x128xf32, #tpu.memory_space<vmem>>, vector<1x1x8x128xf32>,
    %c0_20 = arith.constant 0 : index
    %c2 = arith.constant 2 : index
    %c0_21 = arith.constant 0 : index
    %c0_22 = arith.constant 0 : index
    %21 = vector.load %arg4[%c0_20, %c2, %c0_21, %c0_22] : memref<1x5x8x128xf32, #tpu.memory_space<vmem>>, vector<1x1x8x128xf32>
    %22 = vector.shape_cast %21 : vector<1x1x8x128xf32> to vector<8x128xf32>
    %23 = arith.mulf %5, %5 : vector<2x8x128xf32>
    %cst_23 = arith.constant dense<0.000000e+00> : vector<8x128xf32>
    %24 = vector.multi_reduction <add>, %23, %cst_23 [0] : vector<2x8x128xf32> to vector<8x128xf32>
    %25 = arith.addf %22, %24 : vector<8x128xf32>
    %c0_24 = arith.constant 0 : index
    %c2_25 = arith.constant 2 : index
    %c0_26 = arith.constant 0 : index
    %c0_27 = arith.constant 0 : index
    %26 = vector.load %arg4[%c0_24, %c2_25, %c0_26, %c0_27] : memref<1x5x8x128xf32, #tpu.memory_space<vmem>>, vector<1x1x8x128xf32>
    %27 = vector.shape_cast %26 : vector<1x1x8x128xf32> to vector<8x128xf32>
    %28 = vector.shape_cast %25 : vector<8x128xf32> to vector<1x1x8x128xf32>
    tpu.vector_store %arg4[%c0_24, %c2_25, %c0_26, %c0_27], %28 {strides = array<i32>} : memref<1x5x8x128xf32, #tpu.memory_space<vmem>>, vector<1x1x8x128xf32>,
    %c0_28 = arith.constant 0 : index
    %c3 = arith.constant 3 : index
    %c0_29 = arith.constant 0 : index
    %c0_30 = arith.constant 0 : index
    %29 = vector.load %arg4[%c0_28, %c3, %c0_29, %c0_30] : memref<1x5x8x128xf32, #tpu.memory_space<vmem>>, vector<1x1x8x128xf32>
    %30 = vector.shape_cast %29 : vector<1x1x8x128xf32> to vector<8x128xf32>
    %31 = arith.mulf %6, %6 : vector<2x8x128xf32>
    %cst_31 = arith.constant dense<0.000000e+00> : vector<8x128xf32>
    %32 = vector.multi_reduction <add>, %31, %cst_31 [0] : vector<2x8x128xf32> to vector<8x128xf32>
    %33 = arith.addf %30, %32 : vector<8x128xf32>
    %c0_32 = arith.constant 0 : index
    %c3_33 = arith.constant 3 : index
    %c0_34 = arith.constant 0 : index
    %c0_35 = arith.constant 0 : index
    %34 = vector.load %arg4[%c0_32, %c3_33, %c0_34, %c0_35] : memref<1x5x8x128xf32, #tpu.memory_space<vmem>>, vector<1x1x8x128xf32>
    %35 = vector.shape_cast %34 : vector<1x1x8x128xf32> to vector<8x128xf32>
    %36 = vector.shape_cast %33 : vector<8x128xf32> to vector<1x1x8x128xf32>
    tpu.vector_store %arg4[%c0_32, %c3_33, %c0_34, %c0_35], %36 {strides = array<i32>} : memref<1x5x8x128xf32, #tpu.memory_space<vmem>>, vector<1x1x8x128xf32>,
    %c0_36 = arith.constant 0 : index
    %c4 = arith.constant 4 : index
    %c0_37 = arith.constant 0 : index
    %c0_38 = arith.constant 0 : index
    %37 = vector.load %arg4[%c0_36, %c4, %c0_37, %c0_38] : memref<1x5x8x128xf32, #tpu.memory_space<vmem>>, vector<1x1x8x128xf32>
    %38 = vector.shape_cast %37 : vector<1x1x8x128xf32> to vector<8x128xf32>
    %39 = arith.mulf %5, %6 : vector<2x8x128xf32>
    %cst_39 = arith.constant dense<0.000000e+00> : vector<8x128xf32>
    %40 = vector.multi_reduction <add>, %39, %cst_39 [0] : vector<2x8x128xf32> to vector<8x128xf32>
    %41 = arith.addf %38, %40 : vector<8x128xf32>
    %c0_40 = arith.constant 0 : index
    %c4_41 = arith.constant 4 : index
    %c0_42 = arith.constant 0 : index
    %c0_43 = arith.constant 0 : index
    %42 = vector.load %arg4[%c0_40, %c4_41, %c0_42, %c0_43] : memref<1x5x8x128xf32, #tpu.memory_space<vmem>>, vector<1x1x8x128xf32>
    %43 = vector.shape_cast %42 : vector<1x1x8x128xf32> to vector<8x128xf32>
    %44 = vector.shape_cast %41 : vector<8x128xf32> to vector<1x1x8x128xf32>
    tpu.vector_store %arg4[%c0_40, %c4_41, %c0_42, %c0_43], %44 {strides = array<i32>} : memref<1x5x8x128xf32, #tpu.memory_space<vmem>>, vector<1x1x8x128xf32>,
    return
  }
  func.func @transform_0(%arg0: i32, %arg1: i32) -> (i32, i32) {
    %c1_i32 = arith.constant 1 : i32
    %0 = arith.muli %arg0, %c1_i32 : i32
    %1 = arith.addi %0, %arg1 : i32
    %c0_i32 = arith.constant 0 : i32
    %c0_i32_0 = arith.constant 0 : i32
    return %1, %c0_i32 : i32, i32
  }
  func.func @transform_1(%arg0: i32, %arg1: i32) -> (i32, i32) {
    %c1_i32 = arith.constant 1 : i32
    %0 = arith.muli %arg0, %c1_i32 : i32
    %1 = arith.addi %0, %arg1 : i32
    %c0_i32 = arith.constant 0 : i32
    %c0_i32_0 = arith.constant 0 : i32
    return %1, %c0_i32 : i32, i32
  }
  func.func @transform_2(%arg0: i32, %arg1: i32) -> (i32, i32, i32, i32) {
    %c0_i32 = arith.constant 0 : i32
    %c0_i32_0 = arith.constant 0 : i32
    %c0_i32_1 = arith.constant 0 : i32
    %c0_i32_2 = arith.constant 0 : i32
    return %arg0, %c0_i32, %c0_i32_0, %c0_i32_1 : i32, i32, i32, i32
  }
}

</mosaic_0001>

<llo_original>
// kernel: tpu_custom_call.1
$region0: #{tpu_custom_call.1}
  #allocation0 [shape = 'u32[]', space=smem, size = 0x4, offset = 0x4, fixed_abs, tag = 'smem constant byte address 0x4 - core index']
  #allocation1 [shape = 'u32[144,128]{1,0:T(1,128)}', space=vmem, size = 0x12000, scoped, tag = 'internal scratch']
  %s0 = inlined_call_operand.hbm [shape: f32[32,128], index: 0, kind: input, shape index: {}]
  %s1 = inlined_call_operand.hbm [shape: f32[32,128], index: 1, kind: input, shape index: {}]
  %s2 = inlined_call_operand.hbm [shape: f32[2,5,8,128], index: 2, kind: output, shape index: {}]
  %s3 = sld [smem:[#allocation0]]
  $region53: #{tpu_custom_call.1} parent=0
    _
  %s5 = ssub.s32 1, %s3
  %s6 = scalar_select 0, %s5, %s3
  $region1: #{tpu_custom_call.1} parent=0
    #allocation2 [shape = 'u8[16384]{0}', space=vmem, size = 0x4000, scoped, tag = 'input window, operand 0']
    #allocation3 [shape = 's32[2]{0}', space=sflag, size = 0x8, scoped, tag = 'scoped memory for tpu_custom_call.1']
    #allocation4 [shape = 's32[2]{0}', space=sflag, size = 0x8, scoped, tag = 'scoped memory for tpu_custom_call.1']
    #allocation5 [shape = 'u8[16384]{0}', space=vmem, size = 0x4000, scoped, tag = 'input window, operand 1']
    #allocation6 [shape = 's32[2]{0}', space=sflag, size = 0x8, scoped, tag = 'scoped memory for tpu_custom_call.1']
    #allocation7 [shape = 'u8[40960]{0}', space=vmem, size = 0xa000, scoped, tag = 'output window, operand 0']
    %7 = vsyncpa [#allocation3], 0
    %s8 = scalar_lea.sflag [#allocation3], 1
    %9 = vsyncpa %s8, 0
    %10 = vsyncpa [#allocation6], 0
    %s11 = scalar_lea.sflag [#allocation6], 1
    %12 = vsyncpa %s11, 0
    %13 = vsyncpa [#allocation4], 0
    %s14 = scalar_lea.sflag [#allocation4], 1
    %15 = vsyncpa %s14, 0
    loop: start=0, step=1, limit=4
    $region2: #{tpu_custom_call.1} parent=1 // loop_pre_header
      _
    $region3: #{tpu_custom_call.1} parent=1 // loop_header
      %s17 = sphi 0, %s21
      %p18 = scmp.ge.s32.totalorder %s17, 4
      %s24 = sphi 0, %s36
      %s25 = sphi 0, %s32
      %s26 = sphi 0, %s24
      %s27 = sphi 0, %s25
      %s28 = sphi 0, %s26
      %s29 = sphi 0, %s27
      %s41 = sphi 0, %s43
      %s44 = sphi 0, %s41
      %s45 = sphi 0, %s44
      %s61 = sphi 0, %s45
      %s69 = sphi 0, %s71
      %s72 = sphi 0, %s69
      %s73 = sphi 0, %s72
      %s89 = sphi 0, %s73
      %s95 = sphi 0, %s97
      %s98 = sphi 0, %s95
      %s99 = sphi 0, %s98
      %s115 = sphi 0, %s99
    $region4: #{tpu_custom_call.1} parent=1 // loop_header_branch
      %20 = sbr.rel (%p18) target = $region8
    $region5: #{tpu_custom_call.1} parent=1 // loop_body
      %s22 = ssub.s32 %s17, 1
      %s23 = ssub.s32 %s17, 2
      %s30 = sadd.s32 1, %s25
      %p31 = scmp.ge.s32.totalorder %s30, 1
      %s32 = scalar_select %p31, 0, %s30
      %s33 = sadd.s32 1, %s24
      %s34 = scalar_select %p31, %s33, %s24
      %p35 = scmp.ge.s32.totalorder %s34, 2
      %s36 = scalar_select %p35, 0, %s34
      %s37 = sadd.s32 %s24, %s25
      %s38 = sadd.s32 %s36, %s32
      %s39 = ssub.s32 %s37, %s38
      %p40 = scmp.eq.s32.totalorder %s39, 0
      %s42 = sadd.s32 %s41, 1
      %s43 = scalar_select %p40, %s41, %s42
      %p46 = pneg %p40
      %p47 = scmp.eq.s32.totalorder %s17, 1
      %p48 = por %p46, %p47
      %p49 = scmp.ne.s32.totalorder %s41, %s44
      %p50 = scmp.eq.s32.totalorder %s17, 0
      %p51 = por %p49, %p50
      %p52 = scmp.ne.s32.totalorder %s41, %s44
      %p53 = scmp.eq.s32.totalorder %s22, 1
      %p54 = por %p52, %p53
      %p55 = scmp.ne.s32.totalorder %s44, %s45
      %p56 = scmp.eq.s32.totalorder %s22, 0
      %p57 = por %p55, %p56
      %p58 = scmp.ne.s32.totalorder %s44, %s45
      %p59 = scmp.eq.s32.totalorder %s23, 1
      %p60 = por %p58, %p59
      %p62 = scmp.ne.s32.totalorder %s45, %s61
      %p63 = scmp.eq.s32.totalorder %s23, 0
      %p64 = por %p62, %p63
      %s65 = sadd.s32 %s24, %s25
      %s66 = sadd.s32 %s36, %s32
      %s67 = ssub.s32 %s65, %s66
      %p68 = scmp.eq.s32.totalorder %s67, 0
      %s70 = sadd.s32 %s69, 1
      %s71 = scalar_select %p68, %s69, %s70
      %p74 = pneg %p68
      %p75 = scmp.eq.s32.totalorder %s17, 1
      %p76 = por %p74, %p75
      %p77 = scmp.ne.s32.totalorder %s69, %s72
      %p78 = scmp.eq.s32.totalorder %s17, 0
      %p79 = por %p77, %p78
      %p80 = scmp.ne.s32.totalorder %s69, %s72
      %p81 = scmp.eq.s32.totalorder %s22, 1
      %p82 = por %p80, %p81
      %p83 = scmp.ne.s32.totalorder %s72, %s73
      %p84 = scmp.eq.s32.totalorder %s22, 0
      %p85 = por %p83, %p84
      %p86 = scmp.ne.s32.totalorder %s72, %s73
      %p87 = scmp.eq.s32.totalorder %s23, 1
      %p88 = por %p86, %p87
      %p90 = scmp.ne.s32.totalorder %s73, %s89
      %p91 = scmp.eq.s32.totalorder %s23, 0
      %p92 = por %p90, %p91
      %s93 = ssub.s32 %s24, %s36
      %p94 = scmp.eq.s32.totalorder %s93, 0
      %s96 = sadd.s32 %s95, 1
      %s97 = scalar_select %p94, %s95, %s96
      %p100 = pneg %p94
      %p101 = scmp.eq.s32.totalorder %s17, 1
      %p102 = por %p100, %p101
      %p103 = scmp.ne.s32.totalorder %s95, %s98
      %p104 = scmp.eq.s32.totalorder %s17, 0
      %p105 = por %p103, %p104
      %p106 = scmp.ne.s32.totalorder %s95, %s98
      %p107 = scmp.eq.s32.totalorder %s22, 1
      %p108 = por %p106, %p107
      %p109 = scmp.ne.s32.totalorder %s98, %s99
      %p110 = scmp.eq.s32.totalorder %s22, 0
      %p111 = por %p109, %p110
      %p112 = scmp.ne.s32.totalorder %s98, %s99
      %p113 = scmp.eq.s32.totalorder %s23, 1
      %p114 = por %p112, %p113
      %p116 = scmp.ne.s32.totalorder %s99, %s115
      %p117 = scmp.eq.s32.totalorder %s23, 0
      %p118 = por %p116, %p117
      %p119 = scmp.le.s32.totalorder 1, %s17
      %p120 = scmp.lt.s32.totalorder %s17, 3
      %p121 = pnand %p119, %p120
      %p122 = pneg %p121
      // Predicated region
      $region9: #{tpu_custom_call.1} parent=5 // pred_check
        _
      $region10: #{tpu_custom_call.1} parent=5 // pred_check_branch
        %124 = sbr.rel (%p121) target = $region12
      $region11: #{tpu_custom_call.1} parent=5 // pred_region
        %s125 = ssub.s32 %s17, 1
      $region12: #{tpu_custom_call.1} parent=5 // pred_fallthru
        _
      %p126 = scmp.lt.s32.totalorder %s17, 2
      // Predicated region
      $region13: #{tpu_custom_call.1} parent=5 // pred_check
        %p127 = pneg %p126
      $region14: #{tpu_custom_call.1} parent=5 // pred_check_branch
        %129 = sbr.rel (%p127) target = $region16
      $region15: #{tpu_custom_call.1} parent=5 // pred_region
        // Predicated region
        $region17: #{tpu_custom_call.1} parent=15 // pred_check
          %p130 = pneg %p51
        $region18: #{tpu_custom_call.1} parent=15 // pred_check_branch
          %132 = sbr.rel (%p130) target = $region20
        $region19: #{tpu_custom_call.1} parent=15 // pred_region
          %s133 = sand.u32 %s41, 1
          %s134 = scalar_lea.sflag [#allocation3], %s133
          %s135 = sand.u32 %s41, 1
          %s136 = smul.addr %s135, 16
          %s137 = scalar_lea.vmem [#allocation2], %s136
          %s138 = sadd.s32 %s24, %s25
          %s139 = smul.u32 2, %s138
          %s141 = ssub.s32 256, 256
          %142 = vsyncadd %s134, %s141
          %s143 = smul.addr %s139, 128
          %s144 = scalar_lea.hbm %s0, %s143
          %s145 = sshll.u32 %s137, 4
          %s146 = int_to_ptr.vmem [resolvable:$true] %s145
          %151 = dma.hbm_to_vmem [thread:$0]  %s144, 256, %s146, %s134, 128, 128, 8
        $region20: #{tpu_custom_call.1} parent=15 // pred_fallthru
          _
        // Predicated region
        $region21: #{tpu_custom_call.1} parent=15 // pred_check
          %p152 = pneg %p79
        $region22: #{tpu_custom_call.1} parent=15 // pred_check_branch
          %154 = sbr.rel (%p152) target = $region24
        $region23: #{tpu_custom_call.1} parent=15 // pred_region
          %s155 = sand.u32 %s69, 1
          %s156 = scalar_lea.sflag [#allocation6], %s155
          %s157 = sand.u32 %s69, 1
          %s158 = smul.addr %s157, 16
          %s159 = scalar_lea.vmem [#allocation5], %s158
          %s160 = sadd.s32 %s24, %s25
          %s161 = smul.u32 2, %s160
          %s163 = ssub.s32 256, 256
          %164 = vsyncadd %s156, %s163
          %s165 = smul.addr %s161, 128
          %s166 = scalar_lea.hbm %s1, %s165
          %s167 = sshll.u32 %s159, 4
          %s168 = int_to_ptr.vmem [resolvable:$true] %s167
          %173 = dma.hbm_to_vmem [thread:$0]  %s166, 256, %s168, %s156, 128, 128, 8
        $region24: #{tpu_custom_call.1} parent=15 // pred_fallthru
          _
      $region16: #{tpu_custom_call.1} parent=5 // pred_fallthru
        _
      %p174 = scmp.le.s32.totalorder 1, %s17
      %p175 = scmp.lt.s32.totalorder %s17, 3
      %p176 = pnand %p174, %p175
      %p177 = pneg %p176
      // Predicated region
      $region25: #{tpu_custom_call.1} parent=5 // pred_check
        _
      $region26: #{tpu_custom_call.1} parent=5 // pred_check_branch
        %179 = sbr.rel (%p176) target = $region28
      $region27: #{tpu_custom_call.1} parent=5 // pred_region
        %s180 = ssub.s32 %s17, 1
        %s181 = sand.u32 %s44, 1
        %s182 = scalar_lea.sflag [#allocation3], %s181
        %s183 = sand.u32 %s44, 1
        %s184 = smul.addr %s183, 16
        %s185 = scalar_lea.vmem [#allocation2], %s184
        // Predicated region
        $region29: #{tpu_custom_call.1} parent=27 // pred_check
          %p186 = pneg %p57
        $region30: #{tpu_custom_call.1} parent=27 // pred_check_branch
          %188 = sbr.rel (%p186) target = $region32
        $region31: #{tpu_custom_call.1} parent=27 // pred_region
          %189 = dma.done %s182, 256
        $region32: #{tpu_custom_call.1} parent=27 // pred_fallthru
          _
        %s190 = sand.u32 %s72, 1
        %s191 = scalar_lea.sflag [#allocation6], %s190
        %s192 = sand.u32 %s72, 1
        %s193 = smul.addr %s192, 16
        %s194 = scalar_lea.vmem [#allocation5], %s193
        // Predicated region
        $region33: #{tpu_custom_call.1} parent=27 // pred_check
          %p195 = pneg %p85
        $region34: #{tpu_custom_call.1} parent=27 // pred_check_branch
          %197 = sbr.rel (%p195) target = $region36
        $region35: #{tpu_custom_call.1} parent=27 // pred_region
          %198 = dma.done %s191, 256
        $region36: #{tpu_custom_call.1} parent=27 // pred_fallthru
          _
        %s199 = sand.u32 %s44, 1
        %s200 = scalar_lea.sflag [#allocation3], %s199
        %s201 = sand.u32 %s44, 1
        %s202 = smul.addr %s201, 16
        %s203 = scalar_lea.vmem [#allocation2], %s202
        %p204 = pneg %p57
        %p205 = pneg %p54
        %s206 = sand.u32 %s72, 1
        %s207 = scalar_lea.sflag [#allocation6], %s206
        %s208 = sand.u32 %s72, 1
        %s209 = smul.addr %s208, 16
        %s210 = scalar_lea.vmem [#allocation5], %s209
        %p211 = pneg %p85
        %p212 = pneg %p82
        %p213 = pneg %p111
        %p214 = pneg %p108
        %s215 = sand.u32 %s98, 1
        %s216 = scalar_lea.sflag [#allocation4], %s215
        %s217 = sand.u32 %s98, 1
        %s218 = smul.addr %s217, 40
        %s219 = scalar_lea.vmem [#allocation7], %s218
        %s220 = sadd.s32 %s26, %s27
        %s221 = smul.u32 2, %s220
        %s222 = sadd.s32 %s26, %s27
        %s223 = smul.u32 2, %s222
        %p224 = scmp.eq.s32.totalorder %s27, 0
        // Predicated region
        $region37: #{tpu_custom_call.1} parent=27 // pred_check
          %p225 = pneg %p224
        $region38: #{tpu_custom_call.1} parent=27 // pred_check_branch
          %227 = sbr.rel (%p225) target = $region40
        $region39: #{tpu_custom_call.1} parent=27 // pred_region
          %228 = vst [vmem:[%s219] sm:$0xff] 0.0
          %229 = vst [vmem:[%s219 + $0x8] sm:$0xff] 0.0
          %230 = vst [vmem:[%s219 + $0x10] sm:$0xff] 0.0
          %231 = vst [vmem:[%s219 + $0x18] sm:$0xff] 0.0
          %232 = vst [vmem:[%s219 + $0x20] sm:$0xff] 0.0
        $region40: #{tpu_custom_call.1} parent=27 // pred_fallthru
          _
        %v233 = vld [vmem:[%s185] sm:$0xff]
        %v234 = vld [vmem:[%s185 + $0x8] sm:$0xff]
        %v235 = vld [vmem:[%s194] sm:$0xff]
        %v236 = vld [vmem:[%s194 + $0x8] sm:$0xff]
        %v237 = vld [vmem:[%s219] sm:$0xff]
        %v238 = vadd.f32 %v233, %v234
        %v239 = vadd.f32 %v237, %v238
        %240 = vst [vmem:[%s219] sm:$0xff] %v239
        %s241 = scalar_lea.vmem %s219, 8 [#allocation7]
        %v242 = vld [vmem:[%s241] sm:$0xff]
        %v243 = vadd.f32 %v235, %v236
        %v244 = vadd.f32 %v242, %v243
        %245 = vst [vmem:[%s241] sm:$0xff] %v244
        %s246 = scalar_lea.vmem %s219, 16 [#allocation7]
        %v247 = vld [vmem:[%s246] sm:$0xff]
        %v248 = vmul.f32 %v233, %v233
        %v249 = vmul.f32 %v234, %v234
        %v250 = vadd.f32 %v248, %v249
        %v251 = vadd.f32 %v247, %v250
        %252 = vst [vmem:[%s246] sm:$0xff] %v251
        %s253 = scalar_lea.vmem %s219, 24 [#allocation7]
        %v254 = vld [vmem:[%s253] sm:$0xff]
        %v255 = vmul.f32 %v235, %v235
        %v256 = vmul.f32 %v236, %v236
        %v257 = vadd.f32 %v255, %v256
        %v258 = vadd.f32 %v254, %v257
        %259 = vst [vmem:[%s253] sm:$0xff] %v258
        %s260 = scalar_lea.vmem %s219, 32 [#allocation7]
        %v261 = vld [vmem:[%s260] sm:$0xff]
        %v262 = vmul.f32 %v233, %v235
        %v263 = vmul.f32 %v234, %v236
        %v264 = vadd.f32 %v262, %v263
        %v265 = vadd.f32 %v261, %v264
        %266 = vst [vmem:[%s260] sm:$0xff] %v265
        %s267 = sand.u32 %s98, 1
        %s268 = scalar_lea.sflag [#allocation4], %s267
        %s269 = sand.u32 %s98, 1
        %s270 = smul.addr %s269, 40
        %s271 = scalar_lea.vmem [#allocation7], %s270
        // Predicated region
        $region41: #{tpu_custom_call.1} parent=27 // pred_check
          %p272 = pneg %p108
        $region42: #{tpu_custom_call.1} parent=27 // pred_check_branch
          %274 = sbr.rel (%p272) target = $region44
        $region43: #{tpu_custom_call.1} parent=27 // pred_region
          %s276 = ssub.s32 640, 640
          %277 = vsyncadd %s268, %s276
          %s278 = smul.addr %s26, 5
          %s279 = smul.addr %s278, 128
          %s280 = scalar_lea.hbm %s2, %s279
          %s281 = sshll.u32 %s271, 4
          %s282 = int_to_ptr.vmem [resolvable:$true] %s281
          %287 = dma.vmem_to_hbm [thread:$0]  %s282, 640, %s280, %s268, 128, 128, 8
        $region44: #{tpu_custom_call.1} parent=27 // pred_fallthru
          _
      $region28: #{tpu_custom_call.1} parent=5 // pred_fallthru
        _
      %p288 = scmp.le.s32.totalorder 2, %s17
      // Predicated region
      $region45: #{tpu_custom_call.1} parent=5 // pred_check
        %p289 = pneg %p288
      $region46: #{tpu_custom_call.1} parent=5 // pred_check_branch
        %291 = sbr.rel (%p289) target = $region48
      $region47: #{tpu_custom_call.1} parent=5 // pred_region
        %s292 = ssub.s32 %s17, 2
        // Predicated region
        $region49: #{tpu_custom_call.1} parent=47 // pred_check
          %p293 = pneg %p114
        $region50: #{tpu_custom_call.1} parent=47 // pred_check_branch
          %295 = sbr.rel (%p293) target = $region52
        $region51: #{tpu_custom_call.1} parent=47 // pred_region
          %s296 = sand.u32 %s99, 1
          %s297 = scalar_lea.sflag [#allocation4], %s296
          %s298 = sand.u32 %s99, 1
          %s299 = smul.addr %s298, 40
          %s300 = scalar_lea.vmem [#allocation7], %s299
          %301 = dma.done %s297, 640
        $region52: #{tpu_custom_call.1} parent=47 // pred_fallthru
          _
      $region48: #{tpu_custom_call.1} parent=5 // pred_fallthru
        _
    $region6: #{tpu_custom_call.1} parent=1 // loop_footer
      %s21 = sadd.s32 1, %s17
    $region7: #{tpu_custom_call.1} parent=1 // loop_footer_branch
      %16 = sbr.rel target = $region3
    $region8: #{tpu_custom_call.1} parent=1 // loop_exit
      _
    %302 = vsyncpa [#allocation3], 1
    %s303 = scalar_lea.sflag [#allocation3], 1
    %304 = vsyncpa %s303, 1
    %305 = vsyncpa [#allocation6], 1
    %s306 = scalar_lea.sflag [#allocation6], 1
    %307 = vsyncpa %s306, 1
    %308 = vsyncpa [#allocation4], 1
    %s309 = scalar_lea.sflag [#allocation4], 1
    %310 = vsyncpa %s309, 1

</llo_original>
